<compile_context>
chip_gen: v5e
topology: v5e:2x2
jax: 0.10.0
libtpu: 0.0.40
codegen_flags: <defaults>
</compile_context>

<pallas_src>
import functools
from dataclasses import dataclass

import jax
import jax.numpy as jnp
from jax import lax
from jax.experimental import pallas as pl
from jax.experimental.pallas import tpu as pltpu


@dataclass(frozen=True)
class Config:
    orth_weight: float = 1.0
    var_weight: float = 1.0
    reg_weight: float = 1.0
    reduction_weight: float = 1.0
    sim_weight: float = 1.0
    mmd_weight: float = 1.0
    mmd_kernel_num: int = 5


def _xxt(a, b):
    """a @ b.T contracting the feature dim, f32 accumulation on the MXU."""
    return lax.dot_general(a, b, (((1,), (1,)), ((), ())),
                           preferred_element_type=jnp.float32)


def _reduction_terms(x, orth_w, var_w, reg_w, mm_dtype):
    """orth/var/reg terms of reduction_loss for one [N, D] embedding (f32)."""
    n, d = x.shape
    mean_row = jnp.mean(x, axis=0, keepdims=True)             # [1, D]
    cx = x - mean_row                                          # centered, f32
    # cor(embedding): feature covariance, fact = 1/(N-1). Contract over N
    # directly; operands in bf16 (MXU native), accumulation in f32.
    cxm = cx.astype(mm_dtype)
    cov = lax.dot_general(cxm, cxm, (((0,), (0,)), ((), ())),
                          preferred_element_type=jnp.float32) / float(n - 1)
    row = lax.broadcasted_iota(jnp.int32, (d, d), 0)
    col = lax.broadcasted_iota(jnp.int32, (d, d), 1)
    # torch.mean(abs(triu(cov, 1))) averages over all D*D entries (zeros incl.)
    orth = jnp.sum(jnp.where(col > row, jnp.abs(cov), 0.0)) / float(d * d)
    var = 1.0 / jnp.mean(jnp.abs(cx))
    reg = jnp.mean(jnp.abs(x))
    return orth * orth_w + var * var_w + reg * reg_w


def _fused_kernel(atac_ref, rna_cat_ref, inv_norm_ref, partial_ref, rowmax_ref,
                  *, n_rows, orth_w, var_w, reg_w, kernel_mul, kernel_num,
                  mm_dtype):
    i = pl.program_id(0)
    n = n_rows

    atac = atac_ref[0].astype(jnp.float32)                          # [N, D]
    # Modality i's rna block is a slice of the resident concat (no extra HBM).
    row0 = pl.multiple_of(i * n, n)
    rna = rna_cat_ref[pl.ds(row0, n), :].astype(jnp.float32)        # [N, D]

    # ---- reduction losses ---------------------------------------------------
    red_rna = _reduction_terms(rna, orth_w, var_w, reg_w, mm_dtype)
    red_atac = _reduction_terms(atac, orth_w, var_w, reg_w, mm_dtype)

    # ---- MMD(rna, atac): gram-block form ------------------------------------
    sq_r = jnp.sum(rna * rna, axis=1, keepdims=True)                # [N, 1]
    sq_a = jnp.sum(atac * atac, axis=1, keepdims=True)              # [N, 1]
    rna_mm = rna.astype(mm_dtype)
    atac_mm = atac.astype(mm_dtype)
    l2_rr = jnp.maximum(sq_r + sq_r.T - 2.0 * _xxt(rna_mm, rna_mm), 0.0)
    l2_aa = jnp.maximum(sq_a + sq_a.T - 2.0 * _xxt(atac_mm, atac_mm), 0.0)
    l2_ra = jnp.maximum(sq_r + sq_a.T - 2.0 * _xxt(rna_mm, atac_mm), 0.0)

    # Bandwidth from vector statistics: the sum of the full (2N)x(2N) L2
    # matrix equals 2*(2N)*sum|t_i|^2 - 2*||sum_i t_i||^2, t = [rna; atac].
    # (No [N,N] reductions; single-pass once the grams are tiled.)
    ns = 2 * n
    col_sum = (jnp.sum(rna, axis=0, keepdims=True)
               + jnp.sum(atac, axis=0, keepdims=True))              # [1, D]
    total_sq = jnp.sum(sq_r) + jnp.sum(sq_a)
    l2_total = 2.0 * float(ns) * total_sq - 2.0 * jnp.sum(col_sum * col_sum)
    bandwidth = l2_total / float(ns * ns - ns)
    base_bw = bandwidth / float(kernel_mul ** (kernel_num // 2))

    def kernel_sum(l2):
        # sum_q sum(exp(-l2 / (base_bw * kernel_mul**q))), q = 0..kernel_num-1
        if kernel_mul == 2.0:
            # Repeated squaring: one EUP exp, remaining bandwidths are VPU muls.
            scale = -1.0 / (base_bw * float(2.0 ** (kernel_num - 1)))
            e = jnp.exp(l2 * scale)
            acc = e
            cur = e
            for _ in range(kernel_num - 1):
                cur = cur * cur
                acc = acc + cur
            return jnp.sum(acc)
        acc = jnp.zeros_like(l2)
        for q in range(kernel_num):
            acc = acc + jnp.exp(l2 * (-1.0 / (base_bw * float(kernel_mul ** q))))
        return jnp.sum(acc)

    # mean(XX + YY - XY - YX) over [bs, bs]; XY and YX have identical sums.
    mmd_val = (kernel_sum(l2_rr) + kernel_sum(l2_aa)
               - 2.0 * kernel_sum(l2_ra)) / float(n * n)

    # ---- row-max cosine similarity: max_j cos(atac_i, rna_cat_j) ------------
    a_n = (atac * lax.rsqrt(sq_a + 1e-12)).astype(mm_dtype)         # [N, D]
    sim = _xxt(rna_cat_ref[...].astype(mm_dtype), a_n)              # [M*N, N] f32
    sim = sim * inv_norm_ref[...]          # hoisted 1/|rna_cat_j| row scaling
    maxv = jnp.max(sim, axis=0, keepdims=True)[None]                # (1, 1, N)

    n_pad = rowmax_ref.shape[-1]
    if n_pad != n:
        # Lane-dense full-block fill; pad lanes carry -inf so top_k skips them.
        rowmax_ref[...] = jnp.full((1, 1, n_pad), -jnp.inf, jnp.float32)
    rowmax_ref[:, :, 0:n] = maxv

    # ---- lane-dense partial-loss slab ---------------------------------------
    lane = lax.broadcasted_iota(jnp.int32, (1, 1, 128), 2)
    partial_ref[...] = (jnp.where(lane == 0, red_rna, 0.0)
                        + jnp.where(lane == 1, red_atac, 0.0)
                        + jnp.where(lane == 2, mmd_val, 0.0))


def encoding_loss(atac_embeddings, rna_embeddings, *, dim, p, config,
                  matmul_dtype=jnp.bfloat16):
    # identity_matrix from the torch __init__ is unused by the math; omitted.
    num_mods = len(rna_embeddings)
    assert len(atac_embeddings) == num_mods

    rna_cat = jnp.concatenate(rna_embeddings, axis=0).astype(jnp.float32)  # [M*N, D]
    atac_stack = jnp.stack(atac_embeddings, axis=0).astype(jnp.float32)    # [M, N, D]

    m, n_atac, d = atac_stack.shape
    n_cat = rna_cat.shape[0]
    n_rna = n_cat // num_mods
    assert n_cat == num_mods * n_rna
    assert n_rna == n_atac, "MMD pairing requires equal rna/atac batch sizes"
    assert d == dim

    n_pad = ((n_atac + 127) // 128) * 128   # lane-dense rowmax output width

    # Hoisted, grid-invariant: inverse row norms of the rna concat (the kernel
    # only row-scales the sim matmul output with these).
    inv_norm_r = lax.rsqrt(jnp.sum(rna_cat * rna_cat, axis=1, keepdims=True)
                           + 1e-12)                                   # [M*N, 1]

    kern = functools.partial(
        _fused_kernel,
        n_rows=n_rna,
        orth_w=float(config.orth_weight),
        var_w=float(config.var_weight),
        reg_w=float(config.reg_weight),
        kernel_mul=2.0,
        kernel_num=int(config.mmd_kernel_num),
        mm_dtype=matmul_dtype,
    )

    # Raise v5e's 16 MiB scoped-VMEM default once the (currently untiled)
    # working set outgrows it; stays None (default) at demo sizes.
    b4 = 4
    est = (n_cat * d * b4 + n_cat * b4            # resident concat + inv norms
           + 2 * n_atac * d * b4                  # double-buffered atac tile
           + (3 * n_atac * n_atac + n_cat * n_atac) * b4   # l2 grams + sim
           + 2 * (128 + n_pad) * b4)              # output tiles
    vmem_limit = (int(1.5 * est) + (2 << 20)) if est > (12 << 20) else None

    resident = pl.Buffered(1)   # constant index_map -> nothing to prefetch

    # TODO(synk): for real thousands-row batches the [N,N] grams and the
    #   [M*N, N] sim block must be tiled (row/col grid axes or an in-kernel
    #   emit_pipeline) with a running max / running kernel sums; the
    #   vector-stat bandwidth above already makes that single-pass.  Keep
    #   gram sub-tiles <= ~[64, 256] f32 so acc/cur/l2 fit 64 vregs.
    # TODO(synk): on v7x, force a real 2-TensorCore split of the modality
    #   axis (pltpu.CORE_PARALLEL / pl.core_map); plain "parallel" is a
    #   near-no-op there but is safe on single-core v5e/v6e.
    # TODO(synk): at tiny N/D/M (like the demo) a single-step batched-einsum
    #   kernel would amortize the ~0.35 us/step grid overhead; the M-grid
    #   form is kept because it is the shape that scales.
    partials, rowmax = pl.pallas_call(
        kern,
        grid=(m,),
        in_specs=[
            pl.BlockSpec((1, n_atac, d), lambda i: (i, 0, 0)),
            pl.BlockSpec((n_cat, d), lambda i: (0, 0), pipeline_mode=resident),
            pl.BlockSpec((n_cat, 1), lambda i: (0, 0), pipeline_mode=resident),
        ],
        out_shape=(
            jax.ShapeDtypeStruct((m, 1, 128), jnp.float32),
            jax.ShapeDtypeStruct((m, 1, n_pad), jnp.float32),
        ),
        out_specs=(
            pl.BlockSpec((1, 1, 128), lambda i: (i, 0, 0)),
            pl.BlockSpec((1, 1, n_pad), lambda i: (i, 0, 0)),
        ),
        compiler_params=pltpu.CompilerParams(
            dimension_semantics=("parallel",),
            vmem_limit_bytes=vmem_limit,
        ),
    )(atac_stack, rna_cat, inv_norm_r)

    red_rna = jnp.sum(partials[:, 0, 0]) / num_mods
    red_atac = jnp.sum(partials[:, 0, 1]) / num_mods
    total_reduction = (red_atac + red_rna) * config.reduction_weight

    # Torch sums MMD over modalities (no /num_mods) before weighting.
    mmd = jnp.sum(partials[:, 0, 2]) * config.mmd_weight

    # TODO(synk): top-k has no clean Pallas TPU equivalent; plain-JAX glue on
    # the kernel's lane-dense (M, n_pad) row-max output (-inf pads never rank
    # since k <= n_atac).
    k = int(n_atac * p)
    top_vals, _ = lax.top_k(rowmax[:, 0, :], k)                     # [M, k]
    sim_loss = -(jnp.sum(jnp.mean(top_vals, axis=-1)) / num_mods) \
        * config.sim_weight

    return total_reduction + sim_loss + mmd


if __name__ == "__main__":
    key = jax.random.PRNGKey(0)
    dim = 32        # EncodingLoss(dim=...)
    n = 8           # samples per embedding
    num_mods = 2    # number of atac / rna embedding tensors
    p = 0.8

    keys = jax.random.split(key, 2 * num_mods)
    atac_embeddings = [
        jax.random.normal(keys[i], (n, dim), dtype=jnp.float32)
        for i in range(num_mods)
    ]
    rna_embeddings = [
        jax.random.normal(keys[num_mods + i], (n, dim), dtype=jnp.float32)
        for i in range(num_mods)
    ]

    config = Config(
        orth_weight=1.0, var_weight=1.0, reg_weight=1.0,
        reduction_weight=1.0, sim_weight=1.0, mmd_weight=1.0,
        mmd_kernel_num=5,
    )

    loss_fn = jax.jit(
        lambda a0, a1, r0, r1: encoding_loss(
            [a0, a1], [r0, r1], dim=dim, p=p, config=config
        )
    )
    loss = loss_fn(*atac_embeddings, *rna_embeddings)
    jax.block_until_ready(loss)
    print("KERNEL_OK")
</pallas_src>

<mosaic_0001>
module attributes {stable_mosaic.version = 11 : i64} {
  func.func @_fused_kernel(%arg0: i32, %arg1: memref<1x8x32xf32, #tpu.memory_space<vmem>>, %arg2: memref<16x32xf32, #tpu.memory_space<vmem>>, %arg3: memref<16x1xf32, #tpu.memory_space<vmem>>, %arg4: memref<1x1x128xf32, #tpu.memory_space<vmem>>, %arg5: memref<1x1x128xf32, #tpu.memory_space<vmem>>) attributes {dimension_semantics = [#tpu.dimension_semantics<parallel>], iteration_bounds = array<i64: 2>, scalar_prefetch = 0 : i64, scratch_operands = 0 : i64, tpu.core_type = #tpu.core_type<tc>, window_params = [{transform_indices = @transform_0, window_bounds = array<i64: 1, 8, 32>}, {pipeline_mode = #tpu.pipeline_mode<synchronous>, transform_indices = @transform_1, window_bounds = array<i64: 16, 32>}, {pipeline_mode = #tpu.pipeline_mode<synchronous>, transform_indices = @transform_2, window_bounds = array<i64: 16, 1>}, {transform_indices = @transform_3, window_bounds = array<i64: 1, 1, 128>}, {transform_indices = @transform_4, window_bounds = array<i64: 1, 1, 128>}]} {
    %c0 = arith.constant 0 : index
    %c0_0 = arith.constant 0 : index
    %c0_1 = arith.constant 0 : index
    %0 = vector.load %arg1[%c0, %c0_0, %c0_1] : memref<1x8x32xf32, #tpu.memory_space<vmem>>, vector<1x8x32xf32>
    %1 = vector.shape_cast %0 : vector<1x8x32xf32> to vector<8x32xf32>
    %c8_i32 = arith.constant 8 : i32
    %2 = arith.muli %arg0, %c8_i32 : i32
    %3 = tpu.assume_multiple %2, 8 : i32
    %4 = arith.index_cast %3 : i32 to index
    %c0_2 = arith.constant 0 : index
    %5 = vector.load %arg2[%4, %c0_2] : memref<16x32xf32, #tpu.memory_space<vmem>>, vector<8x32xf32>
    %cst = arith.constant dense<0.000000e+00> : vector<32xf32>
    %6 = vector.multi_reduction <add>, %5, %cst [0] : vector<8x32xf32> to vector<32xf32>
    %7 = vector.shape_cast %6 : vector<32xf32> to vector<1x32xf32>
    %cst_3 = arith.constant 8.000000e+00 : f32
    %8 = vector.broadcast %cst_3 : f32 to vector<1x32xf32>
    %9 = arith.divf %7, %8 : vector<1x32xf32>
    %10 = vector.broadcast %9 : vector<1x32xf32> to vector<8x32xf32>
    %11 = arith.subf %5, %10 : vector<8x32xf32>
    %12 = arith.truncf %11 : vector<8x32xf32> to vector<8x32xbf16>
    %cst_4 = arith.constant dense<0.000000e+00> : vector<32x32xf32>
    %13 = tpu.matmul %12, %12, %cst_4 {dimension_numbers = #tpu.dot_dimension_numbers<[0], [0], [1], [1], [0, 1, 1, 1], [], []>} : vector<8x32xbf16>, vector<8x32xbf16>, vector<32x32xf32> -> vector<32x32xf32>
    %cst_5 = arith.constant 7.000000e+00 : f32
    %14 = vector.broadcast %cst_5 : f32 to vector<32x32xf32>
    %15 = arith.divf %13, %14 : vector<32x32xf32>
    %16 = tpu.iota {dimensions = array<i32: 0>} : vector<32x32xi32>
    %17 = tpu.iota {dimensions = array<i32: 1>} : vector<32x32xi32>
    %18 = arith.cmpi sgt, %17, %16 : vector<32x32xi32>
    %19 = math.absf %15 : vector<32x32xf32>
    %cst_6 = arith.constant 0.000000e+00 : f32
    %20 = vector.broadcast %cst_6 : f32 to vector<32x32xf32>
    %21 = arith.select %18, %19, %20 : vector<32x32xi1>, vector<32x32xf32>
    %22 = vector.shape_cast %21 : vector<32x32xf32> to vector<1x32x32xf32>
    %cst_7 = arith.constant dense<0.000000e+00> : vector<1xf32>
    %23 = vector.multi_reduction <add>, %22, %cst_7 [1, 2] : vector<1x32x32xf32> to vector<1xf32>
    %24 = vector.shape_cast %23 : vector<1xf32> to vector<1x1x1xf32>
    %25 = vector.extract %24[0, 0, 0] : f32 from vector<1x1x1xf32>
    %cst_8 = arith.constant 1.024000e+03 : f32
    %26 = arith.divf %25, %cst_8 : f32
    %27 = math.absf %11 : vector<8x32xf32>
    %28 = vector.shape_cast %27 : vector<8x32xf32> to vector<1x8x32xf32>
    %cst_9 = arith.constant dense<0.000000e+00> : vector<1xf32>
    %29 = vector.multi_reduction <add>, %28, %cst_9 [1, 2] : vector<1x8x32xf32> to vector<1xf32>
    %30 = vector.shape_cast %29 : vector<1xf32> to vector<1x1x1xf32>
    %31 = vector.extract %30[0, 0, 0] : f32 from vector<1x1x1xf32>
    %cst_10 = arith.constant 2.560000e+02 : f32
    %32 = arith.divf %31, %cst_10 : f32
    %cst_11 = arith.constant 1.000000e+00 : f32
    %33 = arith.divf %cst_11, %32 : f32
    %34 = math.absf %5 : vector<8x32xf32>
    %35 = vector.shape_cast %34 : vector<8x32xf32> to vector<1x8x32xf32>
    %cst_12 = arith.constant dense<0.000000e+00> : vector<1xf32>
    %36 = vector.multi_reduction <add>, %35, %cst_12 [1, 2] : vector<1x8x32xf32> to vector<1xf32>
    %37 = vector.shape_cast %36 : vector<1xf32> to vector<1x1x1xf32>
    %38 = vector.extract %37[0, 0, 0] : f32 from vector<1x1x1xf32>
    %cst_13 = arith.constant 2.560000e+02 : f32
    %39 = arith.divf %38, %cst_13 : f32
    %cst_14 = arith.constant 1.000000e+00 : f32
    %40 = arith.mulf %26, %cst_14 : f32
    %cst_15 = arith.constant 1.000000e+00 : f32
    %41 = arith.mulf %33, %cst_15 : f32
    %42 = arith.addf %40, %41 : f32
    %cst_16 = arith.constant 1.000000e+00 : f32
    %43 = arith.mulf %39, %cst_16 : f32
    %44 = arith.addf %42, %43 : f32
    %cst_17 = arith.constant dense<0.000000e+00> : vector<32xf32>
    %45 = vector.multi_reduction <add>, %1, %cst_17 [0] : vector<8x32xf32> to vector<32xf32>
    %46 = vector.shape_cast %45 : vector<32xf32> to vector<1x32xf32>
    %cst_18 = arith.constant 8.000000e+00 : f32
    %47 = vector.broadcast %cst_18 : f32 to vector<1x32xf32>
    %48 = arith.divf %46, %47 : vector<1x32xf32>
    %49 = vector.broadcast %48 : vector<1x32xf32> to vector<8x32xf32>
    %50 = arith.subf %1, %49 : vector<8x32xf32>
    %51 = arith.truncf %50 : vector<8x32xf32> to vector<8x32xbf16>
    %cst_19 = arith.constant dense<0.000000e+00> : vector<32x32xf32>
    %52 = tpu.matmul %51, %51, %cst_19 {dimension_numbers = #tpu.dot_dimension_numbers<[0], [0], [1], [1], [0, 1, 1, 1], [], []>} : vector<8x32xbf16>, vector<8x32xbf16>, vector<32x32xf32> -> vector<32x32xf32>
    %cst_20 = arith.constant 7.000000e+00 : f32
    %53 = vector.broadcast %cst_20 : f32 to vector<32x32xf32>
    %54 = arith.divf %52, %53 : vector<32x32xf32>
    %55 = tpu.iota {dimensions = array<i32: 0>} : vector<32x32xi32>
    %56 = tpu.iota {dimensions = array<i32: 1>} : vector<32x32xi32>
    %57 = arith.cmpi sgt, %56, %55 : vector<32x32xi32>
    %58 = math.absf %54 : vector<32x32xf32>
    %cst_21 = arith.constant 0.000000e+00 : f32
    %59 = vector.broadcast %cst_21 : f32 to vector<32x32xf32>
    %60 = arith.select %57, %58, %59 : vector<32x32xi1>, vector<32x32xf32>
    %61 = vector.shape_cast %60 : vector<32x32xf32> to vector<1x32x32xf32>
    %cst_22 = arith.constant dense<0.000000e+00> : vector<1xf32>
    %62 = vector.multi_reduction <add>, %61, %cst_22 [1, 2] : vector<1x32x32xf32> to vector<1xf32>
    %63 = vector.shape_cast %62 : vector<1xf32> to vector<1x1x1xf32>
    %64 = vector.extract %63[0, 0, 0] : f32 from vector<1x1x1xf32>
    %cst_23 = arith.constant 1.024000e+03 : f32
    %65 = arith.divf %64, %cst_23 : f32
    %66 = math.absf %50 : vector<8x32xf32>
    %67 = vector.shape_cast %66 : vector<8x32xf32> to vector<1x8x32xf32>
    %cst_24 = arith.constant dense<0.000000e+00> : vector<1xf32>
    %68 = vector.multi_reduction <add>, %67, %cst_24 [1, 2] : vector<1x8x32xf32> to vector<1xf32>
    %69 = vector.shape_cast %68 : vector<1xf32> to vector<1x1x1xf32>
    %70 = vector.extract %69[0, 0, 0] : f32 from vector<1x1x1xf32>
    %cst_25 = arith.constant 2.560000e+02 : f32
    %71 = arith.divf %70, %cst_25 : f32
    %cst_26 = arith.constant 1.000000e+00 : f32
    %72 = arith.divf %cst_26, %71 : f32
    %73 = math.absf %1 : vector<8x32xf32>
    %74 = vector.shape_cast %73 : vector<8x32xf32> to vector<1x8x32xf32>
    %cst_27 = arith.constant dense<0.000000e+00> : vector<1xf32>
    %75 = vector.multi_reduction <add>, %74, %cst_27 [1, 2] : vector<1x8x32xf32> to vector<1xf32>
    %76 = vector.shape_cast %75 : vector<1xf32> to vector<1x1x1xf32>
    %77 = vector.extract %76[0, 0, 0] : f32 from vector<1x1x1xf32>
    %cst_28 = arith.constant 2.560000e+02 : f32
    %78 = arith.divf %77, %cst_28 : f32
    %cst_29 = arith.constant 1.000000e+00 : f32
    %79 = arith.mulf %65, %cst_29 : f32
    %cst_30 = arith.constant 1.000000e+00 : f32
    %80 = arith.mulf %72, %cst_30 : f32
    %81 = arith.addf %79, %80 : f32
    %cst_31 = arith.constant 1.000000e+00 : f32
    %82 = arith.mulf %78, %cst_31 : f32
    %83 = arith.addf %81, %82 : f32
    %84 = arith.mulf %5, %5 : vector<8x32xf32>
    %cst_32 = arith.constant dense<0.000000e+00> : vector<8xf32>
    %85 = vector.multi_reduction <add>, %84, %cst_32 [1] : vector<8x32xf32> to vector<8xf32>
    %86 = vector.shape_cast %85 : vector<8xf32> to vector<8x1xf32>
    %87 = arith.mulf %1, %1 : vector<8x32xf32>
    %cst_33 = arith.constant dense<0.000000e+00> : vector<8xf32>
    %88 = vector.multi_reduction <add>, %87, %cst_33 [1] : vector<8x32xf32> to vector<8xf32>
    %89 = vector.shape_cast %88 : vector<8xf32> to vector<8x1xf32>
    %90 = arith.truncf %5 : vector<8x32xf32> to vector<8x32xbf16>
    %91 = arith.truncf %1 : vector<8x32xf32> to vector<8x32xbf16>
    %92 = tpu.transpose %86, [1, 0] : vector<8x1xf32> -> vector<1x8xf32>
    %93 = vector.broadcast %86 : vector<8x1xf32> to vector<8x8xf32>
    %94 = vector.broadcast %92 : vector<1x8xf32> to vector<8x8xf32>
    %95 = arith.addf %93, %94 : vector<8x8xf32>
    %cst_34 = arith.constant dense<0.000000e+00> : vector<8x8xf32>
    %96 = tpu.matmul %90, %90, %cst_34 {dimension_numbers = #tpu.dot_dimension_numbers<[1], [1], [0], [0], [0, 0, 1, 0], [], []>} : vector<8x32xbf16>, vector<8x32xbf16>, vector<8x8xf32> -> vector<8x8xf32>
    %cst_35 = arith.constant 2.000000e+00 : f32
    %97 = vector.broadcast %cst_35 : f32 to vector<8x8xf32>
    %98 = arith.mulf %97, %96 : vector<8x8xf32>
    %99 = arith.subf %95, %98 : vector<8x8xf32>
    %cst_36 = arith.constant 0.000000e+00 : f32
    %100 = vector.broadcast %cst_36 : f32 to vector<8x8xf32>
    %101 = arith.maximumf %99, %100 : vector<8x8xf32>
    %102 = tpu.transpose %89, [1, 0] : vector<8x1xf32> -> vector<1x8xf32>
    %103 = vector.broadcast %89 : vector<8x1xf32> to vector<8x8xf32>
    %104 = vector.broadcast %102 : vector<1x8xf32> to vector<8x8xf32>
    %105 = arith.addf %103, %104 : vector<8x8xf32>
    %cst_37 = arith.constant dense<0.000000e+00> : vector<8x8xf32>
    %106 = tpu.matmul %91, %91, %cst_37 {dimension_numbers = #tpu.dot_dimension_numbers<[1], [1], [0], [0], [0, 0, 1, 0], [], []>} : vector<8x32xbf16>, vector<8x32xbf16>, vector<8x8xf32> -> vector<8x8xf32>
    %cst_38 = arith.constant 2.000000e+00 : f32
    %107 = vector.broadcast %cst_38 : f32 to vector<8x8xf32>
    %108 = arith.mulf %107, %106 : vector<8x8xf32>
    %109 = arith.subf %105, %108 : vector<8x8xf32>
    %cst_39 = arith.constant 0.000000e+00 : f32
    %110 = vector.broadcast %cst_39 : f32 to vector<8x8xf32>
    %111 = arith.maximumf %109, %110 : vector<8x8xf32>
    %112 = tpu.transpose %89, [1, 0] : vector<8x1xf32> -> vector<1x8xf32>
    %113 = vector.broadcast %86 : vector<8x1xf32> to vector<8x8xf32>
    %114 = vector.broadcast %112 : vector<1x8xf32> to vector<8x8xf32>
    %115 = arith.addf %113, %114 : vector<8x8xf32>
    %cst_40 = arith.constant dense<0.000000e+00> : vector<8x8xf32>
    %116 = tpu.matmul %90, %91, %cst_40 {dimension_numbers = #tpu.dot_dimension_numbers<[1], [1], [0], [0], [0, 0, 1, 0], [], []>} : vector<8x32xbf16>, vector<8x32xbf16>, vector<8x8xf32> -> vector<8x8xf32>
    %cst_41 = arith.constant 2.000000e+00 : f32
    %117 = vector.broadcast %cst_41 : f32 to vector<8x8xf32>
    %118 = arith.mulf %117, %116 : vector<8x8xf32>
    %119 = arith.subf %115, %118 : vector<8x8xf32>
    %cst_42 = arith.constant 0.000000e+00 : f32
    %120 = vector.broadcast %cst_42 : f32 to vector<8x8xf32>
    %121 = arith.maximumf %119, %120 : vector<8x8xf32>
    %cst_43 = arith.constant dense<0.000000e+00> : vector<32xf32>
    %122 = vector.multi_reduction <add>, %5, %cst_43 [0] : vector<8x32xf32> to vector<32xf32>
    %123 = vector.shape_cast %122 : vector<32xf32> to vector<1x32xf32>
    %cst_44 = arith.constant dense<0.000000e+00> : vector<32xf32>
    %124 = vector.multi_reduction <add>, %1, %cst_44 [0] : vector<8x32xf32> to vector<32xf32>
    %125 = vector.shape_cast %124 : vector<32xf32> to vector<1x32xf32>
    %126 = arith.addf %123, %125 : vector<1x32xf32>
    %127 = vector.shape_cast %86 : vector<8x1xf32> to vector<1x8x1xf32>
    %cst_45 = arith.constant dense<0.000000e+00> : vector<1xf32>
    %128 = vector.multi_reduction <add>, %127, %cst_45 [1, 2] : vector<1x8x1xf32> to vector<1xf32>
    %129 = vector.shape_cast %128 : vector<1xf32> to vector<1x1x1xf32>
    %130 = vector.extract %129[0, 0, 0] : f32 from vector<1x1x1xf32>
    %131 = vector.shape_cast %89 : vector<8x1xf32> to vector<1x8x1xf32>
    %cst_46 = arith.constant dense<0.000000e+00> : vector<1xf32>
    %132 = vector.multi_reduction <add>, %131, %cst_46 [1, 2] : vector<1x8x1xf32> to vector<1xf32>
    %133 = vector.shape_cast %132 : vector<1xf32> to vector<1x1x1xf32>
    %134 = vector.extract %133[0, 0, 0] : f32 from vector<1x1x1xf32>
    %135 = arith.addf %130, %134 : f32
    %cst_47 = arith.constant 3.200000e+01 : f32
    %136 = arith.mulf %cst_47, %135 : f32
    %137 = arith.mulf %126, %126 : vector<1x32xf32>
    %138 = vector.shape_cast %137 : vector<1x32xf32> to vector<1x1x32xf32>
    %cst_48 = arith.constant dense<0.000000e+00> : vector<1xf32>
    %139 = vector.multi_reduction <add>, %138, %cst_48 [1, 2] : vector<1x1x32xf32> to vector<1xf32>
    %140 = vector.shape_cast %139 : vector<1xf32> to vector<1x1x1xf32>
    %141 = vector.extract %140[0, 0, 0] : f32 from vector<1x1x1xf32>
    %cst_49 = arith.constant 2.000000e+00 : f32
    %142 = arith.mulf %cst_49, %141 : f32
    %143 = arith.subf %136, %142 : f32
    %cst_50 = arith.constant 2.400000e+02 : f32
    %144 = arith.divf %143, %cst_50 : f32
    %cst_51 = arith.constant 4.000000e+00 : f32
    %145 = arith.divf %144, %cst_51 : f32
    %cst_52 = arith.constant 1.600000e+01 : f32
    %146 = arith.mulf %145, %cst_52 : f32
    %cst_53 = arith.constant -1.000000e+00 : f32
    %147 = arith.divf %cst_53, %146 : f32
    %148 = vector.broadcast %147 : f32 to vector<8x8xf32>
    %149 = arith.mulf %101, %148 : vector<8x8xf32>
    %150 = math.exp %149 : vector<8x8xf32>
    %151 = arith.mulf %150, %150 : vector<8x8xf32>
    %152 = arith.addf %150, %151 : vector<8x8xf32>
    %153 = arith.mulf %151, %151 : vector<8x8xf32>
    %154 = arith.addf %152, %153 : vector<8x8xf32>
    %155 = arith.mulf %153, %153 : vector<8x8xf32>
    %156 = arith.addf %154, %155 : vector<8x8xf32>
    %157 = arith.mulf %155, %155 : vector<8x8xf32>
    %158 = arith.addf %156, %157 : vector<8x8xf32>
    %159 = vector.shape_cast %158 : vector<8x8xf32> to vector<1x8x8xf32>
    %cst_54 = arith.constant dense<0.000000e+00> : vector<1xf32>
    %160 = vector.multi_reduction <add>, %159, %cst_54 [1, 2] : vector<1x8x8xf32> to vector<1xf32>
    %161 = vector.shape_cast %160 : vector<1xf32> to vector<1x1x1xf32>
    %162 = vector.extract %161[0, 0, 0] : f32 from vector<1x1x1xf32>
    %cst_55 = arith.constant 1.600000e+01 : f32
    %163 = arith.mulf %145, %cst_55 : f32
    %cst_56 = arith.constant -1.000000e+00 : f32
    %164 = arith.divf %cst_56, %163 : f32
    %165 = vector.broadcast %164 : f32 to vector<8x8xf32>
    %166 = arith.mulf %111, %165 : vector<8x8xf32>
    %167 = math.exp %166 : vector<8x8xf32>
    %168 = arith.mulf %167, %167 : vector<8x8xf32>
    %169 = arith.addf %167, %168 : vector<8x8xf32>
    %170 = arith.mulf %168, %168 : vector<8x8xf32>
    %171 = arith.addf %169, %170 : vector<8x8xf32>
    %172 = arith.mulf %170, %170 : vector<8x8xf32>
    %173 = arith.addf %171, %172 : vector<8x8xf32>
    %174 = arith.mulf %172, %172 : vector<8x8xf32>
    %175 = arith.addf %173, %174 : vector<8x8xf32>
    %176 = vector.shape_cast %175 : vector<8x8xf32> to vector<1x8x8xf32>
    %cst_57 = arith.constant dense<0.000000e+00> : vector<1xf32>
    %177 = vector.multi_reduction <add>, %176, %cst_57 [1, 2] : vector<1x8x8xf32> to vector<1xf32>
    %178 = vector.shape_cast %177 : vector<1xf32> to vector<1x1x1xf32>
    %179 = vector.extract %178[0, 0, 0] : f32 from vector<1x1x1xf32>
    %180 = arith.addf %162, %179 : f32
    %cst_58 = arith.constant 1.600000e+01 : f32
    %181 = arith.mulf %145, %cst_58 : f32
    %cst_59 = arith.constant -1.000000e+00 : f32
    %182 = arith.divf %cst_59, %181 : f32
    %183 = vector.broadcast %182 : f32 to vector<8x8xf32>
    %184 = arith.mulf %121, %183 : vector<8x8xf32>
    %185 = math.exp %184 : vector<8x8xf32>
    %186 = arith.mulf %185, %185 : vector<8x8xf32>
    %187 = arith.addf %185, %186 : vector<8x8xf32>
    %188 = arith.mulf %186, %186 : vector<8x8xf32>
    %189 = arith.addf %187, %188 : vector<8x8xf32>
    %190 = arith.mulf %188, %188 : vector<8x8xf32>
    %191 = arith.addf %189, %190 : vector<8x8xf32>
    %192 = arith.mulf %190, %190 : vector<8x8xf32>
    %193 = arith.addf %191, %192 : vector<8x8xf32>
    %194 = vector.shape_cast %193 : vector<8x8xf32> to vector<1x8x8xf32>
    %cst_60 = arith.constant dense<0.000000e+00> : vector<1xf32>
    %195 = vector.multi_reduction <add>, %194, %cst_60 [1, 2] : vector<1x8x8xf32> to vector<1xf32>
    %196 = vector.shape_cast %195 : vector<1xf32> to vector<1x1x1xf32>
    %197 = vector.extract %196[0, 0, 0] : f32 from vector<1x1x1xf32>
    %cst_61 = arith.constant 2.000000e+00 : f32
    %198 = arith.mulf %cst_61, %197 : f32
    %199 = arith.subf %180, %198 : f32
    %cst_62 = arith.constant 6.400000e+01 : f32
    %200 = arith.divf %199, %cst_62 : f32
    %cst_63 = arith.constant 9.99999996E-13 : f32
    %201 = vector.broadcast %cst_63 : f32 to vector<8x1xf32>
    %202 = arith.addf %89, %201 : vector<8x1xf32>
    %203 = math.rsqrt %202 : vector<8x1xf32>
    %204 = vector.broadcast %203 : vector<8x1xf32> to vector<8x32xf32>
    %205 = arith.mulf %1, %204 : vector<8x32xf32>
    %206 = arith.truncf %205 : vector<8x32xf32> to vector<8x32xbf16>
    %c0_64 = arith.constant 0 : index
    %c0_65 = arith.constant 0 : index
    %207 = vector.load %arg2[%c0_64, %c0_65] : memref<16x32xf32, #tpu.memory_space<vmem>>, vector<16x32xf32>
    %208 = arith.truncf %207 : vector<16x32xf32> to vector<16x32xbf16>
    %cst_66 = arith.constant dense<0.000000e+00> : vector<16x8xf32>
    %209 = tpu.matmul %208, %206, %cst_66 {dimension_numbers = #tpu.dot_dimension_numbers<[1], [1], [0], [0], [0, 0, 1, 0], [], []>} : vector<16x32xbf16>, vector<8x32xbf16>, vector<16x8xf32> -> vector<16x8xf32>
    %c0_67 = arith.constant 0 : index
    %c0_68 = arith.constant 0 : index
    %210 = vector.load %arg3[%c0_67, %c0_68] : memref<16x1xf32, #tpu.memory_space<vmem>>, vector<16x1xf32>
    %211 = vector.broadcast %210 : vector<16x1xf32> to vector<16x8xf32>
    %212 = arith.mulf %209, %211 : vector<16x8xf32>
    %cst_69 = arith.constant dense<0xFF800000> : vector<8xf32>
    %213 = vector.multi_reduction <maximumf>, %212, %cst_69 [0] : vector<16x8xf32> to vector<8xf32>
    %214 = vector.shape_cast %213 : vector<8xf32> to vector<1x8xf32>
    %215 = vector.shape_cast %214 : vector<1x8xf32> to vector<1x1x8xf32>
    %cst_70 = arith.constant 0xFF800000 : f32
    %216 = vector.broadcast %cst_70 : f32 to vector<1x1x128xf32>
    %c0_71 = arith.constant 0 : index
    %c0_72 = arith.constant 0 : index
    %c0_73 = arith.constant 0 : index
    %217 = vector.load %arg5[%c0_71, %c0_72, %c0_73] : memref<1x1x128xf32, #tpu.memory_space<vmem>>, vector<1x1x128xf32>
    tpu.vector_store %arg5[%c0_71, %c0_72, %c0_73], %216 {strides = array<i32>} : memref<1x1x128xf32, #tpu.memory_space<vmem>>, vector<1x1x128xf32>,
    %c0_74 = arith.constant 0 : index
    %c0_75 = arith.constant 0 : index
    %c0_76 = arith.constant 0 : index
    %218 = vector.load %arg5[%c0_74, %c0_75, %c0_76] : memref<1x1x128xf32, #tpu.memory_space<vmem>>, vector<1x1x8xf32>
    tpu.vector_store %arg5[%c0_74, %c0_75, %c0_76], %215 {strides = array<i32>} : memref<1x1x128xf32, #tpu.memory_space<vmem>>, vector<1x1x8xf32>,
    %219 = tpu.iota {dimensions = array<i32: 2>} : vector<1x1x128xi32>
    %c0_i32 = arith.constant 0 : i32
    %220 = vector.broadcast %c0_i32 : i32 to vector<1x1x128xi32>
    %221 = arith.cmpi eq, %219, %220 : vector<1x1x128xi32>
    %cst_77 = arith.constant 0.000000e+00 : f32
    %222 = vector.broadcast %44 : f32 to vector<1x1x128xf32>
    %223 = vector.broadcast %cst_77 : f32 to vector<1x1x128xf32>
    %224 = arith.select %221, %222, %223 : vector<1x1x128xi1>, vector<1x1x128xf32>
    %c1_i32 = arith.constant 1 : i32
    %225 = vector.broadcast %c1_i32 : i32 to vector<1x1x128xi32>
    %226 = arith.cmpi eq, %219, %225 : vector<1x1x128xi32>
    %cst_78 = arith.constant 0.000000e+00 : f32
    %227 = vector.broadcast %83 : f32 to vector<1x1x128xf32>
    %228 = vector.broadcast %cst_78 : f32 to vector<1x1x128xf32>
    %229 = arith.select %226, %227, %228 : vector<1x1x128xi1>, vector<1x1x128xf32>
    %230 = arith.addf %224, %229 : vector<1x1x128xf32>
    %c2_i32 = arith.constant 2 : i32
    %231 = vector.broadcast %c2_i32 : i32 to vector<1x1x128xi32>
    %232 = arith.cmpi eq, %219, %231 : vector<1x1x128xi32>
    %cst_79 = arith.constant 0.000000e+00 : f32
    %233 = vector.broadcast %200 : f32 to vector<1x1x128xf32>
    %234 = vector.broadcast %cst_79 : f32 to vector<1x1x128xf32>
    %235 = arith.select %232, %233, %234 : vector<1x1x128xi1>, vector<1x1x128xf32>
    %236 = arith.addf %230, %235 : vector<1x1x128xf32>
    %c0_80 = arith.constant 0 : index
    %c0_81 = arith.constant 0 : index
    %c0_82 = arith.constant 0 : index
    %237 = vector.load %arg4[%c0_80, %c0_81, %c0_82] : memref<1x1x128xf32, #tpu.memory_space<vmem>>, vector<1x1x128xf32>
    tpu.vector_store %arg4[%c0_80, %c0_81, %c0_82], %236 {strides = array<i32>} : memref<1x1x128xf32, #tpu.memory_space<vmem>>, vector<1x1x128xf32>,
    return
  }
  func.func @transform_0(%arg0: i32) -> (i32, i32, i32) {
    %c0_i32 = arith.constant 0 : i32
    %c0_i32_0 = arith.constant 0 : i32
    %c0_i32_1 = arith.constant 0 : i32
    return %arg0, %c0_i32, %c0_i32_0 : i32, i32, i32
  }
  func.func @transform_1(%arg0: i32) -> (i32, i32) {
    %c0_i32 = arith.constant 0 : i32
    %c0_i32_0 = arith.constant 0 : i32
    %c0_i32_1 = arith.constant 0 : i32
    return %c0_i32, %c0_i32_0 : i32, i32
  }
  func.func @transform_2(%arg0: i32) -> (i32, i32) {
    %c0_i32 = arith.constant 0 : i32
    %c0_i32_0 = arith.constant 0 : i32
    %c0_i32_1 = arith.constant 0 : i32
    return %c0_i32, %c0_i32_0 : i32, i32
  }
  func.func @transform_3(%arg0: i32) -> (i32, i32, i32) {
    %c0_i32 = arith.constant 0 : i32
    %c0_i32_0 = arith.constant 0 : i32
    %c0_i32_1 = arith.constant 0 : i32
    return %arg0, %c0_i32, %c0_i32_0 : i32, i32, i32
  }
  func.func @transform_4(%arg0: i32) -> (i32, i32, i32) {
    %c0_i32 = arith.constant 0 : i32
    %c0_i32_0 = arith.constant 0 : i32
    %c0_i32_1 = arith.constant 0 : i32
    return %arg0, %c0_i32, %c0_i32_0 : i32, i32, i32
  }
}

</mosaic_0001>

<llo_original>
// kernel: _lambda_.1
$region0: #{_lambda_.1}
  #allocation0 [shape = 'u32[]', space=smem, size = 0x4, offset = 0x4, fixed_abs, tag = 'smem constant byte address 0x4 - core index']
  #allocation1 [shape = 'u32[72,128]{1,0:T(1,128)}', space=vmem, size = 0x9000, scoped, tag = 'internal scratch']
  %s0 = inlined_call_operand.vmem [shape: f32[2,8,32], index: 0, kind: input, shape index: {}]
  %s1 = inlined_call_operand.vmem [shape: f32[16,32], index: 1, kind: input, shape index: {}]
  %s2 = inlined_call_operand.vmem [shape: f32[16,1], index: 2, kind: input, shape index: {}]
  %s3 = inlined_call_operand.vmem [shape: f32[2,1,128], index: 3, kind: output, shape index: {0}]
  %s4 = inlined_call_operand.vmem [shape: f32[2,1,128], index: 4, kind: output, shape index: {1}]
  %5 = xla_tuple %s3, %s4
  %s6 = sld [smem:[#allocation0]]
  $region53: #{_lambda_.1} parent=0
    _
  %s8 = ssub.s32 1, %s6
  %s9 = scalar_select 0, %s8, %s6
  loop: start=0, step=1, limit=4
  $region2: #{_lambda_.1} parent=0 // loop_pre_header
    _
  $region3: #{_lambda_.1} parent=0 // loop_header
    %s11 = sphi 0, %s15
    %p12 = scmp.ge.s32.totalorder %s11, 4
    %s21 = sphi 0, %s23
    %s24 = sphi 0, %s21
    %s25 = sphi 0, %s24
    %s41 = sphi 0, %s25
    %s45 = sphi 0, %s45
    %s47 = sphi 0, %s45
    %s48 = sphi 0, %s47
    %s62 = sphi 0, %s48
    %s66 = sphi 0, %s66
    %s68 = sphi 0, %s66
    %s69 = sphi 0, %s68
    %s83 = sphi 0, %s69
    %s89 = sphi 0, %s91
    %s92 = sphi 0, %s89
    %s93 = sphi 0, %s92
    %s109 = sphi 0, %s93
    %s115 = sphi 0, %s117
    %s118 = sphi 0, %s115
    %s119 = sphi 0, %s118
    %s135 = sphi 0, %s119
  $region4: #{_lambda_.1} parent=0 // loop_header_branch
    %14 = sbr.rel (%p12) target = $region8
  $region5: #{_lambda_.1} parent=0 // loop_body
    %s16 = ssub.s32 %s11, 1
    %s17 = ssub.s32 %s11, 2
    %s18 = sadd.s32 %s11, 1
    %s19 = ssub.s32 %s11, %s18
    %p20 = scmp.eq.s32.totalorder %s19, 0
    %s22 = sadd.s32 %s21, 1
    %s23 = scalar_select %p20, %s21, %s22
    %p26 = pneg %p20
    %p27 = scmp.eq.s32.totalorder %s11, 1
    %p28 = por %p26, %p27
    %p29 = scmp.ne.s32.totalorder %s21, %s24
    %p30 = scmp.eq.s32.totalorder %s11, 0
    %p31 = por %p29, %p30
    %p32 = scmp.ne.s32.totalorder %s21, %s24
    %p33 = scmp.eq.s32.totalorder %s16, 1
    %p34 = por %p32, %p33
    %p35 = scmp.ne.s32.totalorder %s24, %s25
    %p36 = scmp.eq.s32.totalorder %s16, 0
    %p37 = por %p35, %p36
    %p38 = scmp.ne.s32.totalorder %s24, %s25
    %p39 = scmp.eq.s32.totalorder %s17, 1
    %p40 = por %p38, %p39
    %p42 = scmp.ne.s32.totalorder %s25, %s41
    %p43 = scmp.eq.s32.totalorder %s17, 0
    %p44 = por %p42, %p43
    %s46 = sadd.s32 %s45, 1
    %p49 = scmp.eq.s32.totalorder %s11, 1
    %p50 = scmp.ne.s32.totalorder %s45, %s47
    %p51 = scmp.eq.s32.totalorder %s11, 0
    %p52 = por %p50, %p51
    %p53 = scmp.ne.s32.totalorder %s45, %s47
    %p54 = scmp.eq.s32.totalorder %s16, 1
    %p55 = por %p53, %p54
    %p56 = scmp.ne.s32.totalorder %s47, %s48
    %p57 = scmp.eq.s32.totalorder %s16, 0
    %p58 = por %p56, %p57
    %p59 = scmp.ne.s32.totalorder %s47, %s48
    %p60 = scmp.eq.s32.totalorder %s17, 1
    %p61 = por %p59, %p60
    %p63 = scmp.ne.s32.totalorder %s48, %s62
    %p64 = scmp.eq.s32.totalorder %s17, 0
    %p65 = por %p63, %p64
    %s67 = sadd.s32 %s66, 1
    %p70 = scmp.eq.s32.totalorder %s11, 1
    %p71 = scmp.ne.s32.totalorder %s66, %s68
    %p72 = scmp.eq.s32.totalorder %s11, 0
    %p73 = por %p71, %p72
    %p74 = scmp.ne.s32.totalorder %s66, %s68
    %p75 = scmp.eq.s32.totalorder %s16, 1
    %p76 = por %p74, %p75
    %p77 = scmp.ne.s32.totalorder %s68, %s69
    %p78 = scmp.eq.s32.totalorder %s16, 0
    %p79 = por %p77, %p78
    %p80 = scmp.ne.s32.totalorder %s68, %s69
    %p81 = scmp.eq.s32.totalorder %s17, 1
    %p82 = por %p80, %p81
    %p84 = scmp.ne.s32.totalorder %s69, %s83
    %p85 = scmp.eq.s32.totalorder %s17, 0
    %p86 = por %p84, %p85
    %s87 = ssub.s32 %s11, %s18
    %p88 = scmp.eq.s32.totalorder %s87, 0
    %s90 = sadd.s32 %s89, 1
    %s91 = scalar_select %p88, %s89, %s90
    %p94 = pneg %p88
    %p95 = scmp.eq.s32.totalorder %s11, 1
    %p96 = por %p94, %p95
    %p97 = scmp.ne.s32.totalorder %s89, %s92
    %p98 = scmp.eq.s32.totalorder %s11, 0
    %p99 = por %p97, %p98
    %p100 = scmp.ne.s32.totalorder %s89, %s92
    %p101 = scmp.eq.s32.totalorder %s16, 1
    %p102 = por %p100, %p101
    %p103 = scmp.ne.s32.totalorder %s92, %s93
    %p104 = scmp.eq.s32.totalorder %s16, 0
    %p105 = por %p103, %p104
    %p106 = scmp.ne.s32.totalorder %s92, %s93
    %p107 = scmp.eq.s32.totalorder %s17, 1
    %p108 = por %p106, %p107
    %p110 = scmp.ne.s32.totalorder %s93, %s109
    %p111 = scmp.eq.s32.totalorder %s17, 0
    %p112 = por %p110, %p111
    %s113 = ssub.s32 %s11, %s18
    %p114 = scmp.eq.s32.totalorder %s113, 0
    %s116 = sadd.s32 %s115, 1
    %s117 = scalar_select %p114, %s115, %s116
    %p120 = pneg %p114
    %p121 = scmp.eq.s32.totalorder %s11, 1
    %p122 = por %p120, %p121
    %p123 = scmp.ne.s32.totalorder %s115, %s118
    %p124 = scmp.eq.s32.totalorder %s11, 0
    %p125 = por %p123, %p124
    %p126 = scmp.ne.s32.totalorder %s115, %s118
    %p127 = scmp.eq.s32.totalorder %s16, 1
    %p128 = por %p126, %p127
    %p129 = scmp.ne.s32.totalorder %s118, %s119
    %p130 = scmp.eq.s32.totalorder %s16, 0
    %p131 = por %p129, %p130
    %p132 = scmp.ne.s32.totalorder %s118, %s119
    %p133 = scmp.eq.s32.totalorder %s17, 1
    %p134 = por %p132, %p133
    %p136 = scmp.ne.s32.totalorder %s119, %s135
    %p137 = scmp.eq.s32.totalorder %s17, 0
    %p138 = por %p136, %p137
    %p139 = scmp.le.s32.totalorder 1, %s11
    %p140 = scmp.lt.s32.totalorder %s11, 3
    %p141 = pnand %p139, %p140
    %p142 = pneg %p141
    // Predicated region
    $region9: #{_lambda_.1} parent=5 // pred_check
      _
    $region10: #{_lambda_.1} parent=5 // pred_check_branch
      %144 = sbr.rel (%p141) target = $region12
    $region11: #{_lambda_.1} parent=5 // pred_region
      %s145 = ssub.s32 %s11, 1
      // Predicated region
      $region13: #{_lambda_.1} parent=11 // pred_check
        %p146 = pneg %p58
      $region14: #{_lambda_.1} parent=11 // pred_check_branch
        %148 = sbr.rel (%p146) target = $region16
      $region15: #{_lambda_.1} parent=11 // pred_region
        _
      $region16: #{_lambda_.1} parent=11 // pred_fallthru
        _
      // Predicated region
      $region17: #{_lambda_.1} parent=11 // pred_check
        %p149 = pneg %p79
      $region18: #{_lambda_.1} parent=11 // pred_check_branch
        %151 = sbr.rel (%p149) target = $region20
      $region19: #{_lambda_.1} parent=11 // pred_region
        _
      $region20: #{_lambda_.1} parent=11 // pred_fallthru
        _
    $region12: #{_lambda_.1} parent=5 // pred_fallthru
      _
    %p152 = scmp.lt.s32.totalorder %s11, 2
    // Predicated region
    $region21: #{_lambda_.1} parent=5 // pred_check
      %p153 = pneg %p152
    $region22: #{_lambda_.1} parent=5 // pred_check_branch
      %155 = sbr.rel (%p153) target = $region24
    $region23: #{_lambda_.1} parent=5 // pred_region
      // Predicated region
      $region25: #{_lambda_.1} parent=23 // pred_check
        %p156 = pneg %p31
      $region26: #{_lambda_.1} parent=23 // pred_check_branch
        %158 = sbr.rel (%p156) target = $region28
      $region27: #{_lambda_.1} parent=23 // pred_region
        %p159 = scmp.lt.s32.totalorder %s11, 1
        %s160 = scalar_select %p159, %s11, 1
        %s161 = smul.addr %s160, 8
        %s162 = scalar_lea.vmem %s0, %s161
      $region28: #{_lambda_.1} parent=23 // pred_fallthru
        _
    $region24: #{_lambda_.1} parent=5 // pred_fallthru
      _
    %p163 = scmp.le.s32.totalorder 1, %s11
    %p164 = scmp.lt.s32.totalorder %s11, 3
    %p165 = pnand %p163, %p164
    %p166 = pneg %p165
    // Predicated region
    $region29: #{_lambda_.1} parent=5 // pred_check
      _
    $region30: #{_lambda_.1} parent=5 // pred_check_branch
      %168 = sbr.rel (%p165) target = $region32
    $region31: #{_lambda_.1} parent=5 // pred_region
      %s169 = ssub.s32 %s11, 1
      %p170 = scmp.lt.s32.totalorder %s16, 1
      %s171 = scalar_select %p170, %s16, 1
      %s172 = smul.addr %s171, 8
      %s173 = scalar_lea.vmem %s0, %s172
      %p174 = pneg %p37
      %p175 = pneg %p34
      %p176 = pneg %p58
      %p177 = pneg %p55
      %p178 = pneg %p79
      %p179 = pneg %p76
      %p180 = pneg %p105
      %p181 = pneg %p102
      %p182 = scmp.lt.s32.totalorder %s16, 1
      %s183 = scalar_select %p182, %s16, 1
      %s184 = scalar_lea.vmem %s3, %s183
      %p185 = pneg %p131
      %p186 = pneg %p128
      %p187 = scmp.lt.s32.totalorder %s16, 1
      %s188 = scalar_select %p187, %s16, 1
      %s189 = scalar_lea.vmem %s4, %s188
      %p190 = scmp.lt.s32.totalorder %s16, 1
      %s191 = scalar_select %p190, %s16, 1
      %s192 = smul.addr %s191, 8
      %s193 = scalar_lea.vmem %s0, %s192
      %p194 = scmp.lt.s32.totalorder %s16, 1
      %s195 = scalar_select %p194, %s16, 1
      %s196 = scalar_lea.vmem %s3, %s195
      %p197 = scmp.lt.s32.totalorder %s16, 1
      %s198 = scalar_select %p197, %s16, 1
      %s199 = scalar_lea.vmem %s4, %s198
      %v201 = vld [vmem:[%s193] sm:$0xff]
      %s202 = smul.u32 %s16, 8
      %s203 = scalar_lea.vmem %s1, %s202
      %v204 = vld [vmem:[%s203] sm:$0xff]
      %vm205 = vcmask 261120
      %v206 = vsel %vm205, %v204, 0.0
      %v207 = vrot.slane %v206, 4
      %v208 = vadd.f32 %v206, %v207
      %v209 = vrot.slane %v208, 2
      %v210 = vadd.f32 %v208, %v209
      %v211 = vrot.slane %v210, 1
      %v212 = vadd.f32 %v210, %v211
      %v213 = vrcp.pop 8.0
      %v214 = vmul.f32 8.0, %v213
      %v215 = vsub.f32 1.0, %v214
      %v216 = vmul.f32 %v213, %v215
      %v217 = vadd.f32 %v213, %v216
      %vm218 = vweird.f32 %v213
      %v219 = vsel %vm218, %v213, %v217
      %v220 = vmul.f32 %v212, %v219
      %v221 = vsub.f32 %v204, %v220
      %v222 = vpack.c.bf16 %v221, %v221
      %223 = vxpose.xlu0.c.b16.start [1/8] %v222, 128
      %224 = vxpose.xlu0.c.b16.cont [2/8] 0, 128
      %225 = vxpose.xlu0.c.b16.cont [3/8] 0, 128
      %226 = vxpose.xlu0.c.b16.cont [4/8] 0, 128
      %227 = vxpose.xlu0.c.b16.cont [5/8] 0, 128
      %228 = vxpose.xlu0.c.b16.cont [6/8] 0, 128
      %229 = vxpose.xlu0.c.b16.cont [7/8] 0, 128
      %230 = vxpose.xlu0.c.b16.end [8/8] 0, 128
      %v231 = vpop.trf.xlu0
      %v232 = vpop.trf.xlu0
      %v233 = vpop.trf.xlu0
      %v234 = vpop.trf.xlu0
      %v235 = vpop.trf.xlu0
      %v236 = vpop.trf.xlu0
      %v237 = vpop.trf.xlu0
      %v238 = vpop.trf.xlu0
      %vm239 = vcmask 64512
      %v241 = vsel %vm239, %v231, 0
      %v244 = vsel %vm239, %v232, 0
      %vm246 = vcmask 1043456
      %v248 = vsel %vm246, %v222, 0
      %250 = vmatpush.bf16.msra.mxu0 0
      %251 = vmatpush.bf16.msra.mxu0 0
      %252 = vmatpush.bf16.msra.mxu0 0
      %253 = vmatpush.bf16.msra.mxu0 0
      %254 = vmatpush.bf16.msra.mxu0 0
      %255 = vmatpush.bf16.msra.mxu0 0
      %256 = vmatpush.bf16.msra.mxu0 0
      %257 = vmatpush.bf16.msra.mxu0 %v248
      %258 = vmatmul.bf16.gmra.mxu0 %v241
      %v259 = vpop.f32.mrf.mxu0
      %v260 = vadd.f32 0.0, %v259
      %v261 = vpop.f32.mrf.mxu0
      %v262 = vadd.f32 0.0, %v261
      %263 = vmatmul.bf16.gmra.mxu0 %v244
      %v264 = vpop.f32.mrf.mxu0
      %v265 = vadd.f32 0.0, %v264
      %v266 = vpop.f32.mrf.mxu0
      %v267 = vadd.f32 0.0, %v266
      %268 = vdwg.mxu0
      %v269 = vrcp.pop 7.0
      %v270 = vmul.f32 7.0, %v269
      %v271 = vsub.f32 1.0, %v270
      %v272 = vmul.f32 %v269, %v271
      %v273 = vadd.f32 %v269, %v272
      %vm274 = vweird.f32 %v269
      %v275 = vsel %vm274, %v269, %v273
      %v276 = vmul.f32 %v260, %v275
      %v277 = vmul.f32 %v262, %v275
      %v278 = vmul.f32 %v265, %v275
      %v279 = vmul.f32 %v267, %v275
      %v280 = vlaneseq
      %v281 = vshrl.u32 %v280, 7
      %v282 = vadd.s32 %v281, 8
      %v283 = vadd.s32 %v281, 16
      %v284 = vadd.s32 %v281, 24
      %v285 = vlaneseq
      %v286 = vand.u32 %v285, 127
      %vm287 = vcmp.gt.s32.totalorder %v286, %v281
      %vm288 = vcmp.gt.s32.totalorder %v286, %v282
      %vm289 = vcmp.gt.s32.totalorder %v286, %v283
      %vm290 = vcmp.gt.s32.totalorder %v286, %v284
      %v291 = vand.u32 2147483647, %v276
      %v292 = vand.u32 2147483647, %v277
      %v293 = vand.u32 2147483647, %v278
      %v294 = vand.u32 2147483647, %v279
      %v295 = vsel %vm287, %v291, 0.0
      %v296 = vsel %vm288, %v292, 0.0
      %v297 = vsel %vm289, %v293, 0.0
      %v298 = vsel %vm290, %v294, 0.0
      %v299 = vsel %vm205, %v295, 0.0
      %v300 = vsel %vm205, %v296, 0.0
      %v301 = vadd.f32 %v299, %v300
      %v302 = vsel %vm205, %v297, 0.0
      %v303 = vadd.f32 %v301, %v302
      %v304 = vsel %vm205, %v298, 0.0
      %v305 = vadd.f32 %v303, %v304
      %306 = vadd.xlane.f32.xlu0 %v305
      %v307 = vpop.xlane.xlu0 %306
      %v308 = vrot.slane %v307, 4
      %v309 = vadd.f32 %v307, %v308
      %v310 = vrot.slane %v309, 2
      %v311 = vadd.f32 %v309, %v310
      %v312 = vrot.slane %v311, 1
      %v313 = vadd.f32 %v311, %v312
      %s314 = vtos %v313
      %v315 = vrcp.pop 1024.0
      %v316 = vmul.f32 1024.0, %v315
      %v317 = vsub.f32 1.0, %v316
      %v318 = vmul.f32 %v315, %v317
      %v319 = vadd.f32 %v315, %v318
      %vm320 = vweird.f32 %v315
      %v321 = vsel %vm320, %v315, %v319
      %s322 = vtos %v321
      %s323 = smul.f32 %s314, %s322
      %v324 = vand.u32 2147483647, %v221
      %v325 = vsel %vm205, %v324, 0.0
      %326 = vadd.xlane.f32.xlu0 %v325
      %v327 = vpop.xlane.xlu0 %326
      %v328 = vrot.slane %v327, 4
      %v329 = vadd.f32 %v327, %v328
      %v330 = vrot.slane %v329, 2
      %v331 = vadd.f32 %v329, %v330
      %v332 = vrot.slane %v331, 1
      %v333 = vadd.f32 %v331, %v332
      %s334 = vtos %v333
      %v335 = vrcp.pop 256.0
      %v336 = vmul.f32 256.0, %v335
      %v337 = vsub.f32 1.0, %v336
      %v338 = vmul.f32 %v335, %v337
      %v339 = vadd.f32 %v335, %v338
      %vm340 = vweird.f32 %v335
      %v341 = vsel %vm340, %v335, %v339
      %s342 = vtos %v341
      %s343 = smul.f32 %s334, %s342
      %v344 = vstv %s343
      %v345 = vrcp.pop %v344
      %v346 = vmul.f32 %v344, %v345
      %v347 = vsub.f32 1.0, %v346
      %v348 = vmul.f32 %v345, %v347
      %v349 = vadd.f32 %v345, %v348
      %vm350 = vweird.f32 %v344
      %vm351 = vweird.f32 %v345
      %vm352 = vmor %vm350, %vm351
      %v353 = vsel %vm352, %v345, %v349
      %v354 = vand.u32 2147483647, %v344
      %vm355 = vcmp.eq.f32.partialorder %v354, 8.507059e+37
      %v356 = vand.u32 %v344, 2147483648
      %v357 = vor.u32 1.1754944e-38, %v356
      %v358 = vsel %vm355, %v357, %v353
      %s359 = vtos %v358
      %v360 = vand.u32 2147483647, %v204
      %v361 = vsel %vm205, %v360, 0.0
      %362 = vadd.xlane.f32.xlu0 %v361
      %v363 = vpop.xlane.xlu0 %362
      %v364 = vrot.slane %v363, 4
      %v365 = vadd.f32 %v363, %v364
      %v366 = vrot.slane %v365, 2
      %v367 = vadd.f32 %v365, %v366
      %v368 = vrot.slane %v367, 1
      %v369 = vadd.f32 %v367, %v368
      %s370 = vtos %v369
      %v371 = vrcp.pop 256.0
      %v372 = vmul.f32 256.0, %v371
      %v373 = vsub.f32 1.0, %v372
      %v374 = vmul.f32 %v371, %v373
      %v375 = vadd.f32 %v371, %v374
      %vm376 = vweird.f32 %v371
      %v377 = vsel %vm376, %v371, %v375
      %s378 = vtos %v377
      %s379 = smul.f32 %s370, %s378
      %s380 = sadd.f32 %s323, %s359
      %s381 = sadd.f32 %s380, %s379
      %v382 = vsel %vm205, %v201, 0.0
      %v383 = vrot.slane %v382, 4
      %v384 = vadd.f32 %v382, %v383
      %v385 = vrot.slane %v384, 2
      %v386 = vadd.f32 %v384, %v385
      %v387 = vrot.slane %v386, 1
      %v388 = vadd.f32 %v386, %v387
      %v389 = vmul.f32 %v388, %v219
      %v390 = vsub.f32 %v201, %v389
      %v391 = vpack.c.bf16 %v390, %v390
      %392 = vxpose.xlu0.c.b16.start [1/8] %v391, 128
      %393 = vxpose.xlu0.c.b16.cont [2/8] 0, 128
      %394 = vxpose.xlu0.c.b16.cont [3/8] 0, 128
      %395 = vxpose.xlu0.c.b16.cont [4/8] 0, 128
      %396 = vxpose.xlu0.c.b16.cont [5/8] 0, 128
      %397 = vxpose.xlu0.c.b16.cont [6/8] 0, 128
      %398 = vxpose.xlu0.c.b16.cont [7/8] 0, 128
      %399 = vxpose.xlu0.c.b16.end [8/8] 0, 128
      %v400 = vpop.trf.xlu0
      %v401 = vpop.trf.xlu0
      %v402 = vpop.trf.xlu0
      %v403 = vpop.trf.xlu0
      %v404 = vpop.trf.xlu0
      %v405 = vpop.trf.xlu0
      %v406 = vpop.trf.xlu0
      %v407 = vpop.trf.xlu0
      %v409 = vsel %vm239, %v400, 0
      %v412 = vsel %vm239, %v401, 0
      %v415 = vsel %vm246, %v391, 0
      %417 = vmatpush.bf16.msra.mxu0 0
      %418 = vmatpush.bf16.msra.mxu0 0
      %419 = vmatpush.bf16.msra.mxu0 0
      %420 = vmatpush.bf16.msra.mxu0 0
      %421 = vmatpush.bf16.msra.mxu0 0
      %422 = vmatpush.bf16.msra.mxu0 0
      %423 = vmatpush.bf16.msra.mxu0 0
      %424 = vmatpush.bf16.msra.mxu0 %v415
      %425 = vmatmul.bf16.gmra.mxu0 %v409
      %v426 = vpop.f32.mrf.mxu0
      %v427 = vadd.f32 0.0, %v426
      %v428 = vpop.f32.mrf.mxu0
      %v429 = vadd.f32 0.0, %v428
      %430 = vmatmul.bf16.gmra.mxu0 %v412
      %v431 = vpop.f32.mrf.mxu0
      %v432 = vadd.f32 0.0, %v431
      %v433 = vpop.f32.mrf.mxu0
      %v434 = vadd.f32 0.0, %v433
      %435 = vdwg.mxu0
      %v436 = vmul.f32 %v427, %v275
      %v437 = vmul.f32 %v429, %v275
      %v438 = vmul.f32 %v432, %v275
      %v439 = vmul.f32 %v434, %v275
      %v440 = vand.u32 2147483647, %v436
      %v441 = vand.u32 2147483647, %v437
      %v442 = vand.u32 2147483647, %v438
      %v443 = vand.u32 2147483647, %v439
      %v444 = vsel %vm287, %v440, 0.0
      %v445 = vsel %vm288, %v441, 0.0
      %v446 = vsel %vm289, %v442, 0.0
      %v447 = vsel %vm290, %v443, 0.0
      %v448 = vsel %vm205, %v444, 0.0
      %v449 = vsel %vm205, %v445, 0.0
      %v450 = vadd.f32 %v448, %v449
      %v451 = vsel %vm205, %v446, 0.0
      %v452 = vadd.f32 %v450, %v451
      %v453 = vsel %vm205, %v447, 0.0
      %v454 = vadd.f32 %v452, %v453
      %455 = vadd.xlane.f32.xlu0 %v454
      %v456 = vpop.xlane.xlu0 %455
      %v457 = vrot.slane %v456, 4
      %v458 = vadd.f32 %v456, %v457
      %v459 = vrot.slane %v458, 2
      %v460 = vadd.f32 %v458, %v459
      %v461 = vrot.slane %v460, 1
      %v462 = vadd.f32 %v460, %v461
      %s463 = vtos %v462
      %v464 = vrcp.pop 1024.0
      %v465 = vmul.f32 1024.0, %v464
      %v466 = vsub.f32 1.0, %v465
      %v467 = vmul.f32 %v464, %v466
      %v468 = vadd.f32 %v464, %v467
      %vm469 = vweird.f32 %v464
      %v470 = vsel %vm469, %v464, %v468
      %s471 = vtos %v470
      %s472 = smul.f32 %s463, %s471
      %v473 = vand.u32 2147483647, %v390
      %v474 = vsel %vm205, %v473, 0.0
      %475 = vadd.xlane.f32.xlu0 %v474
      %v476 = vpop.xlane.xlu0 %475
      %v477 = vrot.slane %v476, 4
      %v478 = vadd.f32 %v476, %v477
      %v479 = vrot.slane %v478, 2
      %v480 = vadd.f32 %v478, %v479
      %v481 = vrot.slane %v480, 1
      %v482 = vadd.f32 %v480, %v481
      %s483 = vtos %v482
      %v484 = vrcp.pop 256.0
      %v485 = vmul.f32 256.0, %v484
      %v486 = vsub.f32 1.0, %v485
      %v487 = vmul.f32 %v484, %v486
      %v488 = vadd.f32 %v484, %v487
      %vm489 = vweird.f32 %v484
      %v490 = vsel %vm489, %v484, %v488
      %s491 = vtos %v490
      %s492 = smul.f32 %s483, %s491
      %v493 = vstv %s492
      %v494 = vrcp.pop %v493
      %v495 = vmul.f32 %v493, %v494
      %v496 = vsub.f32 1.0, %v495
      %v497 = vmul.f32 %v494, %v496
      %v498 = vadd.f32 %v494, %v497
      %vm499 = vweird.f32 %v493
      %vm500 = vweird.f32 %v494
      %vm501 = vmor %vm499, %vm500
      %v502 = vsel %vm501, %v494, %v498
      %v503 = vand.u32 2147483647, %v493
      %vm504 = vcmp.eq.f32.partialorder %v503, 8.507059e+37
      %v505 = vand.u32 %v493, 2147483648
      %v506 = vor.u32 1.1754944e-38, %v505
      %v507 = vsel %vm504, %v506, %v502
      %s508 = vtos %v507
      %v509 = vand.u32 2147483647, %v201
      %v510 = vsel %vm205, %v509, 0.0
      %511 = vadd.xlane.f32.xlu0 %v510
      %v512 = vpop.xlane.xlu0 %511
      %v513 = vrot.slane %v512, 4
      %v514 = vadd.f32 %v512, %v513
      %v515 = vrot.slane %v514, 2
      %v516 = vadd.f32 %v514, %v515
      %v517 = vrot.slane %v516, 1
      %v518 = vadd.f32 %v516, %v517
      %s519 = vtos %v518
      %v520 = vrcp.pop 256.0
      %v521 = vmul.f32 256.0, %v520
      %v522 = vsub.f32 1.0, %v521
      %v523 = vmul.f32 %v520, %v522
      %v524 = vadd.f32 %v520, %v523
      %vm525 = vweird.f32 %v520
      %v526 = vsel %vm525, %v520, %v524
      %s527 = vtos %v526
      %s528 = smul.f32 %s519, %s527
      %s529 = sadd.f32 %s472, %s508
      %s530 = sadd.f32 %s529, %s528
      %v531 = vmul.f32 %v204, %v204
      %v532 = vsel %vm205, %v531, 0.0
      %533 = vadd.xlane.f32.xlu0 %v532
      %v534 = vpop.xlane.xlu0 %533
      %v535 = vmul.f32 %v201, %v201
      %v536 = vsel %vm205, %v535, 0.0
      %537 = vadd.xlane.f32.xlu0 %v536
      %v538 = vpop.xlane.xlu0 %537
      %v539 = vpack.c.bf16 %v204, %v204
      %v540 = vpack.c.bf16 %v201, %v201
      %541 = vxpose.xlu0.b32.start [1/16] %v534, 128
      %542 = vxpose.xlu0.b32.cont [2/16] 0.0, 128
      %543 = vxpose.xlu0.b32.cont [3/16] 0.0, 128
      %544 = vxpose.xlu0.b32.cont [4/16] 0.0, 128
      %545 = vxpose.xlu0.b32.cont [5/16] 0.0, 128
      %546 = vxpose.xlu0.b32.cont [6/16] 0.0, 128
      %547 = vxpose.xlu0.b32.cont [7/16] 0.0, 128
      %548 = vxpose.xlu0.b32.cont [8/16] 0.0, 128
      %549 = vxpose.xlu0.b32.cont [9/16] 0.0, 128
      %550 = vxpose.xlu0.b32.cont [10/16] 0.0, 128
      %551 = vxpose.xlu0.b32.cont [11/16] 0.0, 128
      %552 = vxpose.xlu0.b32.cont [12/16] 0.0, 128
      %553 = vxpose.xlu0.b32.cont [13/16] 0.0, 128
      %554 = vxpose.xlu0.b32.cont [14/16] 0.0, 128
      %555 = vxpose.xlu0.b32.cont [15/16] 0.0, 128
      %556 = vxpose.xlu0.b32.end [16/16] 0.0, 128
      %v557 = vpop.trf.xlu0
      %v558 = vpop.trf.xlu0
      %v559 = vpop.trf.xlu0
      %v560 = vpop.trf.xlu0
      %v561 = vpop.trf.xlu0
      %v562 = vpop.trf.xlu0
      %v563 = vpop.trf.xlu0
      %v564 = vpop.trf.xlu0
      %v565 = vpop.trf.xlu0
      %v566 = vpop.trf.xlu0
      %v567 = vpop.trf.xlu0
      %v568 = vpop.trf.xlu0
      %v569 = vpop.trf.xlu0
      %v570 = vpop.trf.xlu0
      %v571 = vpop.trf.xlu0
      %v572 = vpop.trf.xlu0
      %v573 = vperm.slane %v557, 0
      %v574 = vadd.f32 %v534, %v573
      %v576 = vsel %vm205, %v539, 0
      %578 = vmatpush.bf16.xpose.msra.mxu0 0
      %579 = vmatpush.bf16.xpose.msra.mxu0 0
      %580 = vmatpush.bf16.xpose.msra.mxu0 0
      %581 = vmatpush.bf16.xpose.msra.mxu0 0
      %582 = vmatpush.bf16.xpose.msra.mxu0 0
      %583 = vmatpush.bf16.xpose.msra.mxu0 0
      %584 = vmatpush.bf16.xpose.msra.mxu0 0
      %585 = vmatpush.bf16.xpose.msra.mxu0 %v576
      %586 = vmatmul.bf16.gmra.mxu0 %v576
      %v587 = vpop.f32.mrf.mxu0
      %v588 = vadd.f32 0.0, %v587
      %v589 = vpop.f32.mrf.mxu0
      %590 = vdwg.mxu0
      %v591 = vmul.f32 %v588, 2.0
      %v592 = vsub.f32 %v574, %v591
      %v593 = vmax.f32 %v592, 0.0
      %594 = vxpose.xlu0.b32.start [1/16] %v538, 128
      %595 = vxpose.xlu0.b32.cont [2/16] 0.0, 128
      %596 = vxpose.xlu0.b32.cont [3/16] 0.0, 128
      %597 = vxpose.xlu0.b32.cont [4/16] 0.0, 128
      %598 = vxpose.xlu0.b32.cont [5/16] 0.0, 128
      %599 = vxpose.xlu0.b32.cont [6/16] 0.0, 128
      %600 = vxpose.xlu0.b32.cont [7/16] 0.0, 128
      %601 = vxpose.xlu0.b32.cont [8/16] 0.0, 128
      %602 = vxpose.xlu0.b32.cont [9/16] 0.0, 128
      %603 = vxpose.xlu0.b32.cont [10/16] 0.0, 128
      %604 = vxpose.xlu0.b32.cont [11/16] 0.0, 128
      %605 = vxpose.xlu0.b32.cont [12/16] 0.0, 128
      %606 = vxpose.xlu0.b32.cont [13/16] 0.0, 128
      %607 = vxpose.xlu0.b32.cont [14/16] 0.0, 128
      %608 = vxpose.xlu0.b32.cont [15/16] 0.0, 128
      %609 = vxpose.xlu0.b32.end [16/16] 0.0, 128
      %v610 = vpop.trf.xlu0
      %v611 = vpop.trf.xlu0
      %v612 = vpop.trf.xlu0
      %v613 = vpop.trf.xlu0
      %v614 = vpop.trf.xlu0
      %v615 = vpop.trf.xlu0
      %v616 = vpop.trf.xlu0
      %v617 = vpop.trf.xlu0
      %v618 = vpop.trf.xlu0
      %v619 = vpop.trf.xlu0
      %v620 = vpop.trf.xlu0
      %v621 = vpop.trf.xlu0
      %v622 = vpop.trf.xlu0
      %v623 = vpop.trf.xlu0
      %v624 = vpop.trf.xlu0
      %v625 = vpop.trf.xlu0
      %v626 = vperm.slane %v610, 0
      %v627 = vadd.f32 %v538, %v626
      %v629 = vsel %vm205, %v540, 0
      %631 = vmatpush.bf16.xpose.msra.mxu0 0
      %632 = vmatpush.bf16.xpose.msra.mxu0 0
      %633 = vmatpush.bf16.xpose.msra.mxu0 0
      %634 = vmatpush.bf16.xpose.msra.mxu0 0
      %635 = vmatpush.bf16.xpose.msra.mxu0 0
      %636 = vmatpush.bf16.xpose.msra.mxu0 0
      %637 = vmatpush.bf16.xpose.msra.mxu0 0
      %638 = vmatpush.bf16.xpose.msra.mxu0 %v629
      %639 = vmatmul.bf16.gmra.mxu0 %v629
      %v640 = vpop.f32.mrf.mxu0
      %v641 = vadd.f32 0.0, %v640
      %v642 = vpop.f32.mrf.mxu0
      %643 = vdwg.mxu0
      %v644 = vmul.f32 %v641, 2.0
      %v645 = vsub.f32 %v627, %v644
      %v646 = vmax.f32 %v645, 0.0
      %v647 = vadd.f32 %v534, %v626
      %648 = vmatpush.bf16.xpose.msra.mxu0 0
      %649 = vmatpush.bf16.xpose.msra.mxu0 0
      %650 = vmatpush.bf16.xpose.msra.mxu0 0
      %651 = vmatpush.bf16.xpose.msra.mxu0 0
      %652 = vmatpush.bf16.xpose.msra.mxu0 0
      %653 = vmatpush.bf16.xpose.msra.mxu0 0
      %654 = vmatpush.bf16.xpose.msra.mxu0 0
      %655 = vmatpush.bf16.xpose.msra.mxu0 %v629
      %656 = vmatmul.bf16.gmra.mxu0 %v576
      %v657 = vpop.f32.mrf.mxu0
      %v658 = vadd.f32 0.0, %v657
      %v659 = vpop.f32.mrf.mxu0
      %660 = vdwg.mxu0
      %v661 = vmul.f32 %v658, 2.0
      %v662 = vsub.f32 %v647, %v661
      %v663 = vmax.f32 %v662, 0.0
      %v664 = vadd.f32 %v212, %v388
      %vm665 = vcmask 7168
      %v666 = vsel %vm665, %v534, 0.0
      %667 = vadd.xlane.f32.xlu0 %v666
      %v668 = vpop.xlane.xlu0 %667
      %v669 = vrot.slane %v668, 4
      %v670 = vadd.f32 %v668, %v669
      %v671 = vrot.slane %v670, 2
      %v672 = vadd.f32 %v670, %v671
      %v673 = vrot.slane %v672, 1
      %v674 = vadd.f32 %v672, %v673
      %s675 = vtos %v674
      %v676 = vsel %vm665, %v538, 0.0
      %677 = vadd.xlane.f32.xlu0 %v676
      %v678 = vpop.xlane.xlu0 %677
      %v679 = vrot.slane %v678, 4
      %v680 = vadd.f32 %v678, %v679
      %v681 = vrot.slane %v680, 2
      %v682 = vadd.f32 %v680, %v681
      %v683 = vrot.slane %v682, 1
      %v684 = vadd.f32 %v682, %v683
      %s685 = vtos %v684
      %s686 = sadd.f32 %s675, %s685
      %s687 = smul.f32 %s686, 32.0
      %v688 = vmul.f32 %v664, %v664
      %vm689 = vcmask 253952
      %v690 = vsel %vm689, %v688, 0.0
      %691 = vadd.xlane.f32.xlu0 %v690
      %v692 = vpop.xlane.xlu0 %691
      %v693 = vrot.slane %v692, 4
      %v694 = vadd.f32 %v692, %v693
      %v695 = vrot.slane %v694, 2
      %v696 = vadd.f32 %v694, %v695
      %v697 = vrot.slane %v696, 1
      %v698 = vadd.f32 %v696, %v697
      %s699 = vtos %v698
      %s700 = smul.f32 %s699, 2.0
      %s701 = ssub.f32 %s687, %s700
      %v702 = vrcp.pop 240.0
      %v703 = vmul.f32 240.0, %v702
      %v704 = vsub.f32 1.0, %v703
      %v705 = vmul.f32 %v702, %v704
      %v706 = vadd.f32 %v702, %v705
      %vm707 = vweird.f32 %v702
      %v708 = vsel %vm707, %v702, %v706
      %s709 = vtos %v708
      %s710 = smul.f32 %s701, %s709
      %v711 = vrcp.pop 4.0
      %v712 = vmul.f32 4.0, %v711
      %v713 = vsub.f32 1.0, %v712
      %v714 = vmul.f32 %v711, %v713
      %v715 = vadd.f32 %v711, %v714
      %vm716 = vweird.f32 %v711
      %v717 = vsel %vm716, %v711, %v715
      %s718 = vtos %v717
      %s719 = smul.f32 %s710, %s718
      %s720 = smul.f32 %s719, 16.0
      %v721 = vstv %s720
      %v722 = vrcp.pop %v721
      %v723 = vmul.f32 %v721, %v722
      %v724 = vsub.f32 1.0, %v723
      %v725 = vmul.f32 %v722, %v724
      %v726 = vadd.f32 %v722, %v725
      %vm727 = vweird.f32 %v721
      %vm728 = vweird.f32 %v722
      %vm729 = vmor %vm727, %vm728
      %v730 = vsel %vm729, %v722, %v726
      %v731 = vand.u32 2147483647, %v721
      %vm732 = vcmp.eq.f32.partialorder %v731, 8.507059e+37
      %v733 = vand.u32 %v721, 2147483648
      %v734 = vor.u32 1.1754944e-38, %v733
      %v735 = vsel %vm732, %v734, %v730
      %s736 = vtos %v735
      %s737 = smul.f32 -1.0, %s736
      %v738 = vstv %s737
      %v739 = vmul.f32 %v593, %v738
      %v740 = vmul.f32 %v739, 1.442695
      %v741 = vpow.pop %v740
      %v742 = vmul.f32 %v741, %v741
      %v743 = vadd.f32 %v741, %v742
      %v744 = vmul.f32 %v742, %v742
      %v745 = vadd.f32 %v743, %v744
      %v746 = vmul.f32 %v744, %v744
      %v747 = vadd.f32 %v745, %v746
      %v748 = vmul.f32 %v746, %v746
      %v749 = vadd.f32 %v747, %v748
      %v750 = vsel %vm239, %v749, 0.0
      %751 = vadd.xlane.f32.xlu0 %v750
      %v752 = vpop.xlane.xlu0 %751
      %v753 = vrot.slane %v752, 4
      %v754 = vadd.f32 %v752, %v753
      %v755 = vrot.slane %v754, 2
      %v756 = vadd.f32 %v754, %v755
      %v757 = vrot.slane %v756, 1
      %v758 = vadd.f32 %v756, %v757
      %s759 = vtos %v758
      %v760 = vmul.f32 %v646, %v738
      %v761 = vmul.f32 %v760, 1.442695
      %v762 = vpow.pop %v761
      %v763 = vmul.f32 %v762, %v762
      %v764 = vadd.f32 %v762, %v763
      %v765 = vmul.f32 %v763, %v763
      %v766 = vadd.f32 %v764, %v765
      %v767 = vmul.f32 %v765, %v765
      %v768 = vadd.f32 %v766, %v767
      %v769 = vmul.f32 %v767, %v767
      %v770 = vadd.f32 %v768, %v769
      %v771 = vsel %vm239, %v770, 0.0
      %772 = vadd.xlane.f32.xlu0 %v771
      %v773 = vpop.xlane.xlu0 %772
      %v774 = vrot.slane %v773, 4
      %v775 = vadd.f32 %v773, %v774
      %v776 = vrot.slane %v775, 2
      %v777 = vadd.f32 %v775, %v776
      %v778 = vrot.slane %v777, 1
      %v779 = vadd.f32 %v777, %v778
      %s780 = vtos %v779
      %s781 = sadd.f32 %s759, %s780
      %v782 = vmul.f32 %v663, %v738
      %v783 = vmul.f32 %v782, 1.442695
      %v784 = vpow.pop %v783
      %v785 = vmul.f32 %v784, %v784
      %v786 = vadd.f32 %v784, %v785
      %v787 = vmul.f32 %v785, %v785
      %v788 = vadd.f32 %v786, %v787
      %v789 = vmul.f32 %v787, %v787
      %v790 = vadd.f32 %v788, %v789
      %v791 = vmul.f32 %v789, %v789
      %v792 = vadd.f32 %v790, %v791
      %v793 = vsel %vm239, %v792, 0.0
      %794 = vadd.xlane.f32.xlu0 %v793
      %v795 = vpop.xlane.xlu0 %794
      %v796 = vrot.slane %v795, 4
      %v797 = vadd.f32 %v795, %v796
      %v798 = vrot.slane %v797, 2
      %v799 = vadd.f32 %v797, %v798
      %v800 = vrot.slane %v799, 1
      %v801 = vadd.f32 %v799, %v800
      %s802 = vtos %v801
      %s803 = smul.f32 %s802, 2.0
      %s804 = ssub.f32 %s781, %s803
      %v805 = vrcp.pop 64.0
      %v806 = vmul.f32 64.0, %v805
      %v807 = vsub.f32 1.0, %v806
      %v808 = vmul.f32 %v805, %v807
      %v809 = vadd.f32 %v805, %v808
      %vm810 = vweird.f32 %v805
      %v811 = vsel %vm810, %v805, %v809
      %s812 = vtos %v811
      %s813 = smul.f32 %s804, %s812
      %v814 = vadd.f32 %v538, 1e-12
      %v815 = vrsqrt.pop %v814
      %v816 = vmul.f32 %v815, %v814
      %v817 = vmul.f32 %v816, %v815
      %v818 = vmul.f32 0.5, %v817
      %v819 = vsub.f32 1.5, %v818
      %v820 = vmul.f32 %v815, %v819
      %vm821 = vweird.f32 %v814
      %vm822 = vweird.f32 %v815
      %vm823 = vmor %vm821, %vm822
      %v824 = vsel %vm823, %v815, %v820
      %v825 = vmul.f32 %v201, %v824
      %v826 = vpack.c.bf16 %v825, %v825
      %v827 = vld [vmem:[%s1] sm:$0xff]
      %v828 = vld [vmem:[%s1 + $0x8] sm:$0xff]
      %v829 = vpack.c.bf16 %v828, %v827
      %v831 = vsel %vm205, %v829, 0
      %v834 = vsel %vm205, %v826, 0
      %836 = vmatpush.bf16.xpose.msra.mxu0 0
      %837 = vmatpush.bf16.xpose.msra.mxu0 0
      %838 = vmatpush.bf16.xpose.msra.mxu0 0
      %839 = vmatpush.bf16.xpose.msra.mxu0 0
      %840 = vmatpush.bf16.xpose.msra.mxu0 0
      %841 = vmatpush.bf16.xpose.msra.mxu0 0
      %842 = vmatpush.bf16.xpose.msra.mxu0 0
      %843 = vmatpush.bf16.xpose.msra.mxu0 %v834
      %844 = vmatmul.bf16.gmra.mxu0 %v831
      %v845 = vpop.f32.mrf.mxu0
      %v846 = vadd.f32 0.0, %v845
      %v847 = vpop.f32.mrf.mxu0
      %v848 = vadd.f32 0.0, %v847
      %849 = vdwg.mxu0
      %v850 = vld [vmem:[%s2] sm:$0xff]
      %v851 = vld [vmem:[%s2 + $0x8] sm:$0xff]
      %853 = vset.pattern.permute.xlu0 0
      %854 = vperm.xlu0 %853, %v850
      %v855 = vpop.permute.xlu0 %854
      %858 = vset.pattern.permute.xlu0 0
      %859 = vperm.xlu0 %858, %v851
      %v860 = vpop.permute.xlu0 %859
      %v862 = vmul.f32 %v846, %v855
      %v863 = vmul.f32 %v848, %v860
      %v864 = vsel %vm239, %v862, -inf
      %v865 = vsel %vm239, %v863, -inf
      %v866 = vmax.f32 %v864, %v865
      %v867 = vrot.slane %v866, 4
      %v868 = vmax.f32 %v866, %v867
      %v869 = vrot.slane %v868, 2
      %v870 = vmax.f32 %v868, %v869
      %v871 = vrot.slane %v870, 1
      %v872 = vmax.f32 %v870, %v871
      %873 = vst [vmem:[%s199] sm:$0x1] -inf
      %vm874 = vcmask 57344
      %875 = vst.msk [vmem:[%s199] sm:$0x1] %vm874, %v872
      %vm876 = vcmp.eq.s32.totalorder %v286, 0
      %v877 = vstv %s381
      %v878 = vsel %vm876, %v877, 0.0
      %vm879 = vcmp.eq.s32.totalorder %v286, 1
      %v880 = vstv %s530
      %v881 = vsel %vm879, %v880, 0.0
      %v882 = vadd.f32 %v878, %v881
      %vm883 = vcmp.eq.s32.totalorder %v286, 2
      %v884 = vstv %s813
      %v885 = vsel %vm883, %v884, 0.0
      %v886 = vadd.f32 %v882, %v885
      %887 = vst [vmem:[%s196] sm:$0x1] %v886
      %p888 = scmp.lt.s32.totalorder %s16, 1
      %s889 = scalar_select %p888, %s16, 1
      %s890 = scalar_lea.vmem %s3, %s889
      %p891 = scmp.lt.s32.totalorder %s16, 1
      %s892 = scalar_select %p891, %s16, 1
      %s893 = scalar_lea.vmem %s4, %s892
      // Predicated region
      $region33: #{_lambda_.1} parent=31 // pred_check
        %p894 = pneg %p102
      $region34: #{_lambda_.1} parent=31 // pred_check_branch
        %896 = sbr.rel (%p894) target = $region36
      $region35: #{_lambda_.1} parent=31 // pred_region
        _
      $region36: #{_lambda_.1} parent=31 // pred_fallthru
        _
      // Predicated region
      $region37: #{_lambda_.1} parent=31 // pred_check
        %p897 = pneg %p128
      $region38: #{_lambda_.1} parent=31 // pred_check_branch
        %899 = sbr.rel (%p897) target = $region40
      $region39: #{_lambda_.1} parent=31 // pred_region
        _
      $region40: #{_lambda_.1} parent=31 // pred_fallthru
        _
    $region32: #{_lambda_.1} parent=5 // pred_fallthru
      _
    %p900 = scmp.le.s32.totalorder 2, %s11
    // Predicated region
    $region41: #{_lambda_.1} parent=5 // pred_check
      %p901 = pneg %p900
    $region42: #{_lambda_.1} parent=5 // pred_check_branch
      %903 = sbr.rel (%p901) target = $region44
    $region43: #{_lambda_.1} parent=5 // pred_region
      %s904 = ssub.s32 %s11, 2
      // Predicated region
      $region45: #{_lambda_.1} parent=43 // pred_check
        %p905 = pneg %p108
      $region46: #{_lambda_.1} parent=43 // pred_check_branch
        %907 = sbr.rel (%p905) target = $region48
      $region47: #{_lambda_.1} parent=43 // pred_region
        %p908 = scmp.lt.s32.totalorder %s17, 1
        %s909 = scalar_select %p908, %s17, 1
        %s910 = scalar_lea.vmem %s3, %s909
      $region48: #{_lambda_.1} parent=43 // pred_fallthru
        _
      // Predicated region
      $region49: #{_lambda_.1} parent=43 // pred_check
        %p911 = pneg %p134
      $region50: #{_lambda_.1} parent=43 // pred_check_branch
        %913 = sbr.rel (%p911) target = $region52
      $region51: #{_lambda_.1} parent=43 // pred_region
        %p914 = scmp.lt.s32.totalorder %s17, 1
        %s915 = scalar_select %p914, %s17, 1
        %s916 = scalar_lea.vmem %s4, %s915
      $region52: #{_lambda_.1} parent=43 // pred_fallthru
        _
    $region44: #{_lambda_.1} parent=5 // pred_fallthru
      _
  $region6: #{_lambda_.1} parent=0 // loop_footer
    %s15 = sadd.s32 1, %s11
  $region7: #{_lambda_.1} parent=0 // loop_footer_branch
    %10 = sbr.rel target = $region3
  $region8: #{_lambda_.1} parent=0 // loop_exit
    _

</llo_original>
